<compile_context>
chip_gen: v5e
topology: v5e:2x2
jax: 0.10.0
libtpu: 0.0.40
codegen_flags: <defaults>
</compile_context>

<pallas_src>
import jax
import jax.numpy as jnp
from jax.experimental import pallas as pl
from jax.experimental.pallas import tpu as pltpu

EPS = 1e-5


def _round_up(x, m):
    return (x + m - 1) // m * m


def _choose_tile_rows(H, W, cols):
    """Largest TR dividing H such that the (TR*W, cols) f32 output tile stays <= ~2 MiB."""
    budget = 2 * 1024 * 1024
    best = 1
    for tr in range(1, H + 1):
        if H % tr == 0 and tr * W * cols * 4 <= budget:
            best = tr
    return best


# ------------------------- Pallas kernels -------------------------

def _deconv_stats_kernel(x_ref, w_ref, y_ref, csum_ref, cssq_ref):
    # x: (1, TR, W, Cin)   w: (Cin, 4*Cp)   y: (1, TR, W, 4*Cp)
    # csum/cssq: (1, 1, 1, 4*Cp)  per-tile per-column sum and centered sum-of-squares.
    _, tr, ww, cin = x_ref.shape
    rows = tr * ww
    x2 = x_ref[...].reshape(rows, cin)
    # K = Cin is tiny so the MXU is underutilized; the op is HBM-bound, tiles are sized for the
    # HBM roofline (per review).
    y2 = jnp.dot(x2, w_ref[...], preferred_element_type=jnp.float32)   # (rows, 4*Cp)
    y_ref[...] = y2.reshape(y_ref.shape)
    # Fused BatchNorm statistics epilogue (per column; (di,dj,co) groups are collapsed later).
    s = jnp.sum(y2, axis=0, keepdims=True)                 # (1, 4*Cp)
    m = s * (1.0 / rows)
    d = y2 - m
    q = jnp.sum(d * d, axis=0, keepdims=True)              # (1, 4*Cp), centered -> no cancellation
    csum_ref[...] = s.reshape(csum_ref.shape)
    cssq_ref[...] = q.reshape(cssq_ref.shape)


def _deconv_bias_relu_kernel(x_ref, w_ref, b_ref, y_ref):
    # bn=False path: GEMM + bias + ReLU fused in one pass.
    _, tr, ww, cin = x_ref.shape
    rows = tr * ww
    x2 = x_ref[...].reshape(rows, cin)
    y2 = jnp.dot(x2, w_ref[...], preferred_element_type=jnp.float32) + b_ref[...]
    y_ref[...] = jnp.maximum(y2, 0.0).reshape(y_ref.shape)


def _bn_relu_kernel(y_ref, scale_ref, shift_ref, o_ref):
    # y: (1, TR, W, 4*Cp)   scale/shift: (1, 1, 1, 4*Cp)  -> one FMA + ReLU per element.
    o_ref[...] = jnp.maximum(y_ref[...] * scale_ref[...] + shift_ref[...], 0.0)


# ------------------------- Wrapper -------------------------

def deconv2d_bn_forward(x_nchw, weight, bias, gamma, beta, bn=True):
    """x_nchw: (N, Cin, H, W) f32;  weight: (Cin, Cout, 2, 2) (PyTorch ConvTranspose2d layout);
       bias, gamma, beta: (Cout,).  Returns (N, Cout, 2H, 2W) f32."""
    N, Cin, H, W = x_nchw.shape
    Cout = weight.shape[1]
    assert weight.shape[2:] == (2, 2)

    Cp = _round_up(Cout, 32)       # pad channels so 4*Cp is a multiple of 128 (lane-dense stores)
    cols = 4 * Cp

    # Layout glue: NCHW -> NHWC (the conv itself runs in Pallas).
    x4 = jnp.transpose(x_nchw, (0, 2, 3, 1)).astype(jnp.float32)       # (N, H, W, Cin)

    # weight -> (Cin, 2, 2, Cp) -> (Cin, 4*Cp); column order = (di, dj, co), group-major.
    wp = jnp.pad(weight.astype(jnp.float32), ((0, 0), (0, Cp - Cout), (0, 0), (0, 0)))
    w2d = jnp.transpose(wp, (0, 2, 3, 1)).reshape(Cin, cols)
    # TODO(synk): cast x4/w2d to bfloat16 (keeping f32 accumulate) on v6e/v7x when the model
    # tolerates it — halves DMA bytes; kept f32 here for exact parity with the f32 reference.

    TR = _choose_tile_rows(H, W, cols)
    HB = H // TR
    rows = TR * W
    grid = (N, HB)

    cparams = pltpu.CompilerParams(
        dimension_semantics=("parallel", "parallel"),   # shards row tiles across v7x's 2 TCs
        vmem_limit_bytes=32 * 1024 * 1024,              # tiles sized well under this on all gens
    )

    y_spec = pl.BlockSpec((1, TR, W, cols), lambda n, h: (n, h, 0, 0))
    x_spec = pl.BlockSpec((1, TR, W, Cin), lambda n, h: (n, h, 0, 0))
    w_spec = pl.BlockSpec((Cin, cols), lambda n, h: (0, 0))            # resident weight tile

    if bn:
        # ConvTranspose2d bias dropped: a per-channel constant before BatchNorm is exactly
        # cancelled by the mean subtraction (saves a VALU add + a DMA stream).
        stat_spec = pl.BlockSpec((1, 1, 1, cols), lambda n, h: (n, h, 0, 0))
        y4, csum, cssq = pl.pallas_call(
            _deconv_stats_kernel,
            grid=grid,
            in_specs=[x_spec, w_spec],
            out_specs=[y_spec, stat_spec, stat_spec],
            out_shape=(
                jax.ShapeDtypeStruct((N, H, W, cols), jnp.float32),
                jax.ShapeDtypeStruct((N, HB, 1, cols), jnp.float32),
                jax.ShapeDtypeStruct((N, HB, 1, cols), jnp.float32),
            ),
            compiler_params=cparams,
        )(x4, w2d)

        # --- combine per-tile chunks into global per-channel stats (tiny, plain JAX) ---
        # Each (tile, column) pair is a chunk of `rows` elements of channel co = column % Cp
        # (columns are group-major).  Chan's parallel-variance combine keeps f32 accuracy.
        M2 = N * H * W * 4                                  # elements per channel (= N*2H*2W)
        csum_c = csum.reshape(N * HB * 4, Cp)
        cssq_c = cssq.reshape(N * HB * 4, Cp)
        mean = jnp.sum(csum_c, axis=0) / M2                 # (Cp,)
        chunk_mean = csum_c / rows
        var = (jnp.sum(cssq_c, axis=0)
               + rows * jnp.sum((chunk_mean - mean[None, :]) ** 2, axis=0)) / M2  # biased var

        gamma_p = jnp.pad(gamma.astype(jnp.float32), (0, Cp - Cout))
        beta_p = jnp.pad(beta.astype(jnp.float32), (0, Cp - Cout))
        scale = gamma_p * jax.lax.rsqrt(var + EPS)
        shift = beta_p - mean * scale
        scale4 = jnp.tile(scale, 4).reshape(1, 1, 1, cols)
        shift4 = jnp.tile(shift, 4).reshape(1, 1, 1, cols)

        vec_spec = pl.BlockSpec((1, 1, 1, cols), lambda n, h: (0, 0, 0, 0))
        out4 = pl.pallas_call(
            _bn_relu_kernel,
            grid=grid,
            in_specs=[y_spec, vec_spec, vec_spec],
            out_specs=y_spec,
            out_shape=jax.ShapeDtypeStruct((N, H, W, cols), jnp.float32),
            compiler_params=cparams,
        )(y4, scale4, shift4)
    else:
        bias_p = jnp.pad(bias.astype(jnp.float32), (0, Cp - Cout))
        b4 = jnp.tile(bias_p, 4).reshape(1, cols)
        b_spec = pl.BlockSpec((1, cols), lambda n, h: (0, 0))
        out4 = pl.pallas_call(
            _deconv_bias_relu_kernel,
            grid=grid,
            in_specs=[x_spec, w_spec, b_spec],
            out_specs=y_spec,
            out_shape=jax.ShapeDtypeStruct((N, H, W, cols), jnp.float32),
            compiler_params=cparams,
        )(x4, w2d, b4)

    # Fold the 2x2 pixel-shuffle and NHWC->NCHW into ONE final transpose (needed anyway for the
    # PyTorch layout) — no standalone shuffle round trip through HBM.
    out6 = out4.reshape(N, H, W, 2, 2, Cp)[..., :Cout]
    out = jnp.transpose(out6, (0, 5, 1, 3, 2, 4)).reshape(N, Cout, 2 * H, 2 * W)
    return out


# ------------------------- Pure-JAX reference -------------------------

def _conv_t_ref(x_nchw, weight, bias):
    N, Cin, H, W = x_nchw.shape
    Cout = weight.shape[1]
    t = jnp.einsum("ncij,cokl->noikjl", x_nchw, weight,
                   precision=jax.lax.Precision.HIGHEST)          # (N, Cout, H, 2, W, 2)
    return t.reshape(N, Cout, 2 * H, 2 * W) + bias[None, :, None, None]


def _reference(x_nchw, weight, bias, gamma, beta, bn=True):
    y = _conv_t_ref(x_nchw, weight, bias)
    if not bn:
        return jnp.maximum(y, 0.0)
    mean = jnp.mean(y, axis=(0, 2, 3), keepdims=True)
    var = jnp.mean((y - mean) ** 2, axis=(0, 2, 3), keepdims=True)
    yhat = (y - mean) * jax.lax.rsqrt(var + EPS)
    out = yhat * gamma[None, :, None, None] + beta[None, :, None, None]
    return jnp.maximum(out, 0.0)


if __name__ == "__main__":
    key = jax.random.PRNGKey(0)
    k_x, k_w, k_b, k_g, k_be = jax.random.split(key, 5)

    N, Cin, Cout, H, W = 2, 4, 8, 16, 16          # output will be (2, 8, 32, 32)
    x = jax.random.normal(k_x, (N, Cin, H, W), dtype=jnp.float32)
    weight = jax.random.normal(k_w, (Cin, Cout, 2, 2), dtype=jnp.float32) * 0.1
    bias = jax.random.normal(k_b, (Cout,), dtype=jnp.float32) * 0.1
    gamma = 1.0 + 0.1 * jax.random.normal(k_g, (Cout,), dtype=jnp.float32)
    beta = 0.1 * jax.random.normal(k_be, (Cout,), dtype=jnp.float32)

    # bn=True (module default)
    out = jax.block_until_ready(deconv2d_bn_forward(x, weight, bias, gamma, beta, bn=True))
    ref = _reference(x, weight, bias, gamma, beta, bn=True)
    assert out.shape == (N, Cout, 2 * H, 2 * W), out.shape
    assert jnp.allclose(out, ref, atol=1e-4, rtol=1e-4), float(jnp.max(jnp.abs(out - ref)))

    # bn=False path
    out_nb = jax.block_until_ready(deconv2d_bn_forward(x, weight, bias, gamma, beta, bn=False))
    ref_nb = _reference(x, weight, bias, gamma, beta, bn=False)
    assert jnp.allclose(out_nb, ref_nb, atol=1e-4, rtol=1e-4), float(jnp.max(jnp.abs(out_nb - ref_nb)))

    print("KERNEL_OK")
</pallas_src>

<mosaic_0001>
module attributes {stable_mosaic.version = 11 : i64} {
  func.func @_deconv_stats_kernel(%arg0: i32, %arg1: i32, %arg2: memref<1x16x16x4xf32, #tpu.memory_space<vmem>>, %arg3: memref<4x128xf32, #tpu.memory_space<vmem>>, %arg4: memref<1x16x16x128xf32, #tpu.memory_space<vmem>>, %arg5: memref<1x1x1x128xf32, #tpu.memory_space<vmem>>, %arg6: memref<1x1x1x128xf32, #tpu.memory_space<vmem>>) attributes {dimension_semantics = [#tpu.dimension_semantics<parallel>, #tpu.dimension_semantics<parallel>], iteration_bounds = array<i64: 2, 1>, scalar_prefetch = 0 : i64, scratch_operands = 0 : i64, tpu.core_type = #tpu.core_type<tc>, window_params = [{transform_indices = @transform_0, window_bounds = array<i64: 1, 16, 16, 4>}, {pipeline_mode = #tpu.pipeline_mode<synchronous>, transform_indices = @transform_1, window_bounds = array<i64: 4, 128>}, {transform_indices = @transform_2, window_bounds = array<i64: 1, 16, 16, 128>}, {transform_indices = @transform_3, window_bounds = array<i64: 1, 1, 1, 128>}, {transform_indices = @transform_4, window_bounds = array<i64: 1, 1, 1, 128>}]} {
    %c0 = arith.constant 0 : index
    %c0_0 = arith.constant 0 : index
    %c0_1 = arith.constant 0 : index
    %c0_2 = arith.constant 0 : index
    %0 = vector.load %arg2[%c0, %c0_0, %c0_1, %c0_2] : memref<1x16x16x4xf32, #tpu.memory_space<vmem>>, vector<1x16x16x4xf32>
    %1 = vector.shape_cast %0 : vector<1x16x16x4xf32> to vector<256x4xf32>
    %c0_3 = arith.constant 0 : index
    %c0_4 = arith.constant 0 : index
    %2 = vector.load %arg3[%c0_3, %c0_4] : memref<4x128xf32, #tpu.memory_space<vmem>>, vector<4x128xf32>
    %cst = arith.constant dense<0.000000e+00> : vector<256x128xf32>
    %3 = tpu.matmul %1, %2, %cst {dimension_numbers = #tpu.dot_dimension_numbers<[1], [0], [0], [1], [0, 0, 1, 1], [], []>} : vector<256x4xf32>, vector<4x128xf32>, vector<256x128xf32> -> vector<256x128xf32>
    %4 = vector.shape_cast %3 : vector<256x128xf32> to vector<1x16x16x128xf32>
    %c0_5 = arith.constant 0 : index
    %c0_6 = arith.constant 0 : index
    %c0_7 = arith.constant 0 : index
    %c0_8 = arith.constant 0 : index
    %5 = vector.load %arg4[%c0_5, %c0_6, %c0_7, %c0_8] : memref<1x16x16x128xf32, #tpu.memory_space<vmem>>, vector<1x16x16x128xf32>
    tpu.vector_store %arg4[%c0_5, %c0_6, %c0_7, %c0_8], %4 {strides = array<i32>} : memref<1x16x16x128xf32, #tpu.memory_space<vmem>>, vector<1x16x16x128xf32>,
    %cst_9 = arith.constant dense<0.000000e+00> : vector<128xf32>
    %6 = vector.multi_reduction <add>, %3, %cst_9 [0] : vector<256x128xf32> to vector<128xf32>
    %7 = vector.shape_cast %6 : vector<128xf32> to vector<1x128xf32>
    %cst_10 = arith.constant 3.906250e-03 : f32
    %8 = vector.broadcast %cst_10 : f32 to vector<1x128xf32>
    %9 = arith.mulf %7, %8 : vector<1x128xf32>
    %10 = vector.broadcast %9 : vector<1x128xf32> to vector<256x128xf32>
    %11 = arith.subf %3, %10 : vector<256x128xf32>
    %12 = arith.mulf %11, %11 : vector<256x128xf32>
    %cst_11 = arith.constant dense<0.000000e+00> : vector<128xf32>
    %13 = vector.multi_reduction <add>, %12, %cst_11 [0] : vector<256x128xf32> to vector<128xf32>
    %14 = vector.shape_cast %13 : vector<128xf32> to vector<1x128xf32>
    %15 = vector.shape_cast %7 : vector<1x128xf32> to vector<1x1x1x128xf32>
    %c0_12 = arith.constant 0 : index
    %c0_13 = arith.constant 0 : index
    %c0_14 = arith.constant 0 : index
    %c0_15 = arith.constant 0 : index
    %16 = vector.load %arg5[%c0_12, %c0_13, %c0_14, %c0_15] : memref<1x1x1x128xf32, #tpu.memory_space<vmem>>, vector<1x1x1x128xf32>
    tpu.vector_store %arg5[%c0_12, %c0_13, %c0_14, %c0_15], %15 {strides = array<i32>} : memref<1x1x1x128xf32, #tpu.memory_space<vmem>>, vector<1x1x1x128xf32>,
    %17 = vector.shape_cast %14 : vector<1x128xf32> to vector<1x1x1x128xf32>
    %c0_16 = arith.constant 0 : index
    %c0_17 = arith.constant 0 : index
    %c0_18 = arith.constant 0 : index
    %c0_19 = arith.constant 0 : index
    %18 = vector.load %arg6[%c0_16, %c0_17, %c0_18, %c0_19] : memref<1x1x1x128xf32, #tpu.memory_space<vmem>>, vector<1x1x1x128xf32>
    tpu.vector_store %arg6[%c0_16, %c0_17, %c0_18, %c0_19], %17 {strides = array<i32>} : memref<1x1x1x128xf32, #tpu.memory_space<vmem>>, vector<1x1x1x128xf32>,
    return
  }
  func.func @transform_0(%arg0: i32, %arg1: i32) -> (i32, i32, i32, i32) {
    %c0_i32 = arith.constant 0 : i32
    %c0_i32_0 = arith.constant 0 : i32
    %c0_i32_1 = arith.constant 0 : i32
    return %arg0, %arg1, %c0_i32, %c0_i32_0 : i32, i32, i32, i32
  }
  func.func @transform_1(%arg0: i32, %arg1: i32) -> (i32, i32) {
    %c0_i32 = arith.constant 0 : i32
    %c0_i32_0 = arith.constant 0 : i32
    %c0_i32_1 = arith.constant 0 : i32
    return %c0_i32, %c0_i32_0 : i32, i32
  }
  func.func @transform_2(%arg0: i32, %arg1: i32) -> (i32, i32, i32, i32) {
    %c0_i32 = arith.constant 0 : i32
    %c0_i32_0 = arith.constant 0 : i32
    %c0_i32_1 = arith.constant 0 : i32
    return %arg0, %arg1, %c0_i32, %c0_i32_0 : i32, i32, i32, i32
  }
  func.func @transform_3(%arg0: i32, %arg1: i32) -> (i32, i32, i32, i32) {
    %c0_i32 = arith.constant 0 : i32
    %c0_i32_0 = arith.constant 0 : i32
    %c0_i32_1 = arith.constant 0 : i32
    return %arg0, %arg1, %c0_i32, %c0_i32_0 : i32, i32, i32, i32
  }
  func.func @transform_4(%arg0: i32, %arg1: i32) -> (i32, i32, i32, i32) {
    %c0_i32 = arith.constant 0 : i32
    %c0_i32_0 = arith.constant 0 : i32
    %c0_i32_1 = arith.constant 0 : i32
    return %arg0, %arg1, %c0_i32, %c0_i32_0 : i32, i32, i32, i32
  }
}

</mosaic_0001>

<llo_original>
// kernel: tpu_custom_call.1
$region0: #{tpu_custom_call.1}
  #allocation0 [shape = 'u32[]', space=smem, size = 0x4, offset = 0x4, fixed_abs, tag = 'smem constant byte address 0x4 - core index']
  #allocation1 [shape = 'u32[72,128]{1,0:T(1,128)}', space=vmem, size = 0x9000, scoped, tag = 'internal scratch']
  %s0 = inlined_call_operand.vmem [shape: f32[2,16,16,4], index: 0, kind: input, shape index: {}]
  %s1 = inlined_call_operand.vmem [shape: f32[4,128], index: 1, kind: input, shape index: {}]
  %s2 = inlined_call_operand.hbm [shape: f32[2,16,16,128], index: 2, kind: output, shape index: {0}]
  %s3 = inlined_call_operand.hbm [shape: f32[2,1,1,128], index: 3, kind: output, shape index: {1}]
  %s4 = inlined_call_operand.hbm [shape: f32[2,1,1,128], index: 4, kind: output, shape index: {2}]
  %5 = xla_tuple %s2, %s3, %s4
  %s6 = sld [smem:[#allocation0]]
  $region57: #{tpu_custom_call.1} parent=0
    _
  %s8 = ssub.s32 1, %s6
  %s9 = scalar_select 0, %s8, %s6
  $region1: #{tpu_custom_call.1} parent=0
    #allocation2 [shape = 'u8[262144]{0}', space=vmem, size = 0x40000, scoped, tag = 'output window, operand 0']
    #allocation3 [shape = 's32[2]{0}', space=sflag, size = 0x8, scoped, tag = 'scoped memory for tpu_custom_call.1']
    #allocation4 [shape = 'u8[1024]{0}', space=vmem, size = 0x400, scoped, tag = 'output window, operand 1']
    #allocation5 [shape = 's32[2]{0}', space=sflag, size = 0x8, scoped, tag = 'scoped memory for tpu_custom_call.1']
    #allocation6 [shape = 'u8[1024]{0}', space=vmem, size = 0x400, scoped, tag = 'output window, operand 2']
    %10 = vsyncpa [#allocation3], 0
    %s11 = scalar_lea.sflag [#allocation3], 1
    %12 = vsyncpa %s11, 0
    %13 = vsyncpa [#allocation5], 0
    %s14 = scalar_lea.sflag [#allocation5], 1
    %15 = vsyncpa %s14, 0
    loop: start=0, step=1, limit=4
    $region2: #{tpu_custom_call.1} parent=1 // loop_pre_header
      _
    $region3: #{tpu_custom_call.1} parent=1 // loop_header
      %s17 = sphi 0, %s21
      %p18 = scmp.ge.s32.totalorder %s17, 4
      %s24 = sphi 0, %s36
      %s25 = sphi 0, %s32
      %s26 = sphi 0, %s24
      %s27 = sphi 0, %s25
      %s28 = sphi 0, %s26
      %s29 = sphi 0, %s27
      %s41 = sphi 0, %s43
      %s44 = sphi 0, %s41
      %s45 = sphi 0, %s44
      %s61 = sphi 0, %s45
      %s65 = sphi 0, %s65
      %s67 = sphi 0, %s65
      %s68 = sphi 0, %s67
      %s82 = sphi 0, %s68
      %s90 = sphi 0, %s92
      %s93 = sphi 0, %s90
      %s94 = sphi 0, %s93
      %s110 = sphi 0, %s94
      %s118 = sphi 0, %s120
      %s121 = sphi 0, %s118
      %s122 = sphi 0, %s121
      %s138 = sphi 0, %s122
      %s146 = sphi 0, %s148
      %s149 = sphi 0, %s146
      %s150 = sphi 0, %s149
      %s166 = sphi 0, %s150
    $region4: #{tpu_custom_call.1} parent=1 // loop_header_branch
      %20 = sbr.rel (%p18) target = $region8
    $region5: #{tpu_custom_call.1} parent=1 // loop_body
      %s22 = ssub.s32 %s17, 1
      %s23 = ssub.s32 %s17, 2
      %s30 = sadd.s32 1, %s25
      %p31 = scmp.ge.s32.totalorder %s30, 1
      %s32 = scalar_select %p31, 0, %s30
      %s33 = sadd.s32 1, %s24
      %s34 = scalar_select %p31, %s33, %s24
      %p35 = scmp.ge.s32.totalorder %s34, 2
      %s36 = scalar_select %p35, 0, %s34
      %s37 = ssub.s32 %s24, %s36
      %s38 = ssub.s32 %s25, %s32
      %s39 = sor.u32 %s37, %s38
      %p40 = scmp.eq.s32.totalorder %s39, 0
      %s42 = sadd.s32 %s41, 1
      %s43 = scalar_select %p40, %s41, %s42
      %p46 = pneg %p40
      %p47 = scmp.eq.s32.totalorder %s17, 1
      %p48 = por %p46, %p47
      %p49 = scmp.ne.s32.totalorder %s41, %s44
      %p50 = scmp.eq.s32.totalorder %s17, 0
      %p51 = por %p49, %p50
      %p52 = scmp.ne.s32.totalorder %s41, %s44
      %p53 = scmp.eq.s32.totalorder %s22, 1
      %p54 = por %p52, %p53
      %p55 = scmp.ne.s32.totalorder %s44, %s45
      %p56 = scmp.eq.s32.totalorder %s22, 0
      %p57 = por %p55, %p56
      %p58 = scmp.ne.s32.totalorder %s44, %s45
      %p59 = scmp.eq.s32.totalorder %s23, 1
      %p60 = por %p58, %p59
      %p62 = scmp.ne.s32.totalorder %s45, %s61
      %p63 = scmp.eq.s32.totalorder %s23, 0
      %p64 = por %p62, %p63
      %s66 = sadd.s32 %s65, 1
      %p69 = scmp.eq.s32.totalorder %s17, 1
      %p70 = scmp.ne.s32.totalorder %s65, %s67
      %p71 = scmp.eq.s32.totalorder %s17, 0
      %p72 = por %p70, %p71
      %p73 = scmp.ne.s32.totalorder %s65, %s67
      %p74 = scmp.eq.s32.totalorder %s22, 1
      %p75 = por %p73, %p74
      %p76 = scmp.ne.s32.totalorder %s67, %s68
      %p77 = scmp.eq.s32.totalorder %s22, 0
      %p78 = por %p76, %p77
      %p79 = scmp.ne.s32.totalorder %s67, %s68
      %p80 = scmp.eq.s32.totalorder %s23, 1
      %p81 = por %p79, %p80
      %p83 = scmp.ne.s32.totalorder %s68, %s82
      %p84 = scmp.eq.s32.totalorder %s23, 0
      %p85 = por %p83, %p84
      %s86 = ssub.s32 %s24, %s36
      %s87 = ssub.s32 %s25, %s32
      %s88 = sor.u32 %s86, %s87
      %p89 = scmp.eq.s32.totalorder %s88, 0
      %s91 = sadd.s32 %s90, 1
      %s92 = scalar_select %p89, %s90, %s91
      %p95 = pneg %p89
      %p96 = scmp.eq.s32.totalorder %s17, 1
      %p97 = por %p95, %p96
      %p98 = scmp.ne.s32.totalorder %s90, %s93
      %p99 = scmp.eq.s32.totalorder %s17, 0
      %p100 = por %p98, %p99
      %p101 = scmp.ne.s32.totalorder %s90, %s93
      %p102 = scmp.eq.s32.totalorder %s22, 1
      %p103 = por %p101, %p102
      %p104 = scmp.ne.s32.totalorder %s93, %s94
      %p105 = scmp.eq.s32.totalorder %s22, 0
      %p106 = por %p104, %p105
      %p107 = scmp.ne.s32.totalorder %s93, %s94
      %p108 = scmp.eq.s32.totalorder %s23, 1
      %p109 = por %p107, %p108
      %p111 = scmp.ne.s32.totalorder %s94, %s110
      %p112 = scmp.eq.s32.totalorder %s23, 0
      %p113 = por %p111, %p112
      %s114 = ssub.s32 %s24, %s36
      %s115 = ssub.s32 %s25, %s32
      %s116 = sor.u32 %s114, %s115
      %p117 = scmp.eq.s32.totalorder %s116, 0
      %s119 = sadd.s32 %s118, 1
      %s120 = scalar_select %p117, %s118, %s119
      %p123 = pneg %p117
      %p124 = scmp.eq.s32.totalorder %s17, 1
      %p125 = por %p123, %p124
      %p126 = scmp.ne.s32.totalorder %s118, %s121
      %p127 = scmp.eq.s32.totalorder %s17, 0
      %p128 = por %p126, %p127
      %p129 = scmp.ne.s32.totalorder %s118, %s121
      %p130 = scmp.eq.s32.totalorder %s22, 1
      %p131 = por %p129, %p130
      %p132 = scmp.ne.s32.totalorder %s121, %s122
      %p133 = scmp.eq.s32.totalorder %s22, 0
      %p134 = por %p132, %p133
      %p135 = scmp.ne.s32.totalorder %s121, %s122
      %p136 = scmp.eq.s32.totalorder %s23, 1
      %p137 = por %p135, %p136
      %p139 = scmp.ne.s32.totalorder %s122, %s138
      %p140 = scmp.eq.s32.totalorder %s23, 0
      %p141 = por %p139, %p140
      %s142 = ssub.s32 %s24, %s36
      %s143 = ssub.s32 %s25, %s32
      %s144 = sor.u32 %s142, %s143
      %p145 = scmp.eq.s32.totalorder %s144, 0
      %s147 = sadd.s32 %s146, 1
      %s148 = scalar_select %p145, %s146, %s147
      %p151 = pneg %p145
      %p152 = scmp.eq.s32.totalorder %s17, 1
      %p153 = por %p151, %p152
      %p154 = scmp.ne.s32.totalorder %s146, %s149
      %p155 = scmp.eq.s32.totalorder %s17, 0
      %p156 = por %p154, %p155
      %p157 = scmp.ne.s32.totalorder %s146, %s149
      %p158 = scmp.eq.s32.totalorder %s22, 1
      %p159 = por %p157, %p158
      %p160 = scmp.ne.s32.totalorder %s149, %s150
      %p161 = scmp.eq.s32.totalorder %s22, 0
      %p162 = por %p160, %p161
      %p163 = scmp.ne.s32.totalorder %s149, %s150
      %p164 = scmp.eq.s32.totalorder %s23, 1
      %p165 = por %p163, %p164
      %p167 = scmp.ne.s32.totalorder %s150, %s166
      %p168 = scmp.eq.s32.totalorder %s23, 0
      %p169 = por %p167, %p168
      %p170 = scmp.le.s32.totalorder 1, %s17
      %p171 = scmp.lt.s32.totalorder %s17, 3
      %p172 = pnand %p170, %p171
      %p173 = pneg %p172
      // Predicated region
      $region9: #{tpu_custom_call.1} parent=5 // pred_check
        _
      $region10: #{tpu_custom_call.1} parent=5 // pred_check_branch
        %175 = sbr.rel (%p172) target = $region12
      $region11: #{tpu_custom_call.1} parent=5 // pred_region
        %s176 = ssub.s32 %s17, 1
        // Predicated region
        $region13: #{tpu_custom_call.1} parent=11 // pred_check
          %p177 = pneg %p78
        $region14: #{tpu_custom_call.1} parent=11 // pred_check_branch
          %179 = sbr.rel (%p177) target = $region16
        $region15: #{tpu_custom_call.1} parent=11 // pred_region
          _
        $region16: #{tpu_custom_call.1} parent=11 // pred_fallthru
          _
      $region12: #{tpu_custom_call.1} parent=5 // pred_fallthru
        _
      %p180 = scmp.lt.s32.totalorder %s17, 2
      // Predicated region
      $region17: #{tpu_custom_call.1} parent=5 // pred_check
        %p181 = pneg %p180
      $region18: #{tpu_custom_call.1} parent=5 // pred_check_branch
        %183 = sbr.rel (%p181) target = $region20
      $region19: #{tpu_custom_call.1} parent=5 // pred_region
        // Predicated region
        $region21: #{tpu_custom_call.1} parent=19 // pred_check
          %p184 = pneg %p51
        $region22: #{tpu_custom_call.1} parent=19 // pred_check_branch
          %186 = sbr.rel (%p184) target = $region24
        $region23: #{tpu_custom_call.1} parent=19 // pred_region
          %s187 = smul.u32 16, %s25
          %p188 = scmp.lt.s32.totalorder %s24, 1
          %s189 = scalar_select %p188, %s24, 1
          %p190 = scmp.lt.s32.totalorder %s187, 15
          %s191 = scalar_select %p190, %s187, 15
          %s192 = smul.addr %s191, 2
          %s193 = smul.addr %s189, 32
          %s194 = sadd.s32 %s192, %s193
          %s195 = smul.addr %s194, 8
          %s196 = scalar_lea.vmem %s0, %s195
          %s197 = smul.u32 16, %s25
        $region24: #{tpu_custom_call.1} parent=19 // pred_fallthru
          _
      $region20: #{tpu_custom_call.1} parent=5 // pred_fallthru
        _
      %p198 = scmp.le.s32.totalorder 1, %s17
      %p199 = scmp.lt.s32.totalorder %s17, 3
      %p200 = pnand %p198, %p199
      %p201 = pneg %p200
      // Predicated region
      $region25: #{tpu_custom_call.1} parent=5 // pred_check
        _
      $region26: #{tpu_custom_call.1} parent=5 // pred_check_branch
        %203 = sbr.rel (%p200) target = $region28
      $region27: #{tpu_custom_call.1} parent=5 // pred_region
        %s204 = ssub.s32 %s17, 1
        %s205 = smul.u32 16, %s27
        %p206 = scmp.lt.s32.totalorder %s26, 1
        %s207 = scalar_select %p206, %s26, 1
        %p208 = scmp.lt.s32.totalorder %s205, 15
        %s209 = scalar_select %p208, %s205, 15
        %s210 = smul.addr %s209, 2
        %s211 = smul.addr %s207, 32
        %s212 = sadd.s32 %s210, %s211
        %s213 = smul.addr %s212, 8
        %s214 = scalar_lea.vmem %s0, %s213
        %p215 = pneg %p57
        %p216 = pneg %p54
        %p217 = pneg %p78
        %p218 = pneg %p75
        %p219 = pneg %p106
        %p220 = pneg %p103
        %s221 = sand.u32 %s93, 1
        %s222 = scalar_lea.sflag [#allocation3], %s221
        %s223 = sand.u32 %s93, 1
        %s224 = smul.addr %s223, 256
        %s225 = scalar_lea.vmem [#allocation2], %s224
        %p226 = pneg %p134
        %p227 = pneg %p131
        %s228 = sand.u32 %s22, 1
        %s229 = scalar_lea.sflag [#allocation5], %s228
        %s230 = sand.u32 %s121, 1
        %s231 = scalar_lea.vmem [#allocation4], %s230
        %p232 = pneg %p162
        %p233 = pneg %p159
        %s234 = sand.u32 %s22, 1
        %s235 = scalar_lea.sflag [#allocation5], %s234
        %s236 = sand.u32 %s149, 1
        %s237 = scalar_lea.vmem [#allocation6], %s236
        %s238 = smul.u32 16, %s27
        %p239 = scmp.lt.s32.totalorder %s26, 1
        %s240 = scalar_select %p239, %s26, 1
        %p241 = scmp.lt.s32.totalorder %s238, 15
        %s242 = scalar_select %p241, %s238, 15
        %s243 = smul.addr %s242, 2
        %s244 = smul.addr %s240, 32
        %s245 = sadd.s32 %s243, %s244
        %s246 = smul.addr %s245, 8
        %s247 = scalar_lea.vmem %s0, %s246
        %s248 = smul.u32 16, %s27
        %s249 = smul.u32 16, %s27
        %v250 = vld [vmem:[%s247] sm:$0xff]
        %v251 = vld [vmem:[%s247 + $0x8] sm:$0xff]
        %v252 = vld [vmem:[%s247 + $0x10] sm:$0xff]
        %v253 = vld [vmem:[%s247 + $0x18] sm:$0xff]
        %v254 = vld [vmem:[%s247 + $0x20] sm:$0xff]
        %v255 = vld [vmem:[%s247 + $0x28] sm:$0xff]
        %v256 = vld [vmem:[%s247 + $0x30] sm:$0xff]
        %v257 = vld [vmem:[%s247 + $0x38] sm:$0xff]
        %v258 = vld [vmem:[%s247 + $0x40] sm:$0xff]
        %v259 = vld [vmem:[%s247 + $0x48] sm:$0xff]
        %v260 = vld [vmem:[%s247 + $0x50] sm:$0xff]
        %v261 = vld [vmem:[%s247 + $0x58] sm:$0xff]
        %v262 = vld [vmem:[%s247 + $0x60] sm:$0xff]
        %v263 = vld [vmem:[%s247 + $0x68] sm:$0xff]
        %v264 = vld [vmem:[%s247 + $0x70] sm:$0xff]
        %v265 = vld [vmem:[%s247 + $0x78] sm:$0xff]
        %v266 = vld [vmem:[%s247 + $0x80] sm:$0xff]
        %v267 = vld [vmem:[%s247 + $0x88] sm:$0xff]
        %v268 = vld [vmem:[%s247 + $0x90] sm:$0xff]
        %v269 = vld [vmem:[%s247 + $0x98] sm:$0xff]
        %v270 = vld [vmem:[%s247 + $0xa0] sm:$0xff]
        %v271 = vld [vmem:[%s247 + $0xa8] sm:$0xff]
        %v272 = vld [vmem:[%s247 + $0xb0] sm:$0xff]
        %v273 = vld [vmem:[%s247 + $0xb8] sm:$0xff]
        %v274 = vld [vmem:[%s247 + $0xc0] sm:$0xff]
        %v275 = vld [vmem:[%s247 + $0xc8] sm:$0xff]
        %v276 = vld [vmem:[%s247 + $0xd0] sm:$0xff]
        %v277 = vld [vmem:[%s247 + $0xd8] sm:$0xff]
        %v278 = vld [vmem:[%s247 + $0xe0] sm:$0xff]
        %v279 = vld [vmem:[%s247 + $0xe8] sm:$0xff]
        %v280 = vld [vmem:[%s247 + $0xf0] sm:$0xff]
        %v281 = vld [vmem:[%s247 + $0xf8] sm:$0xff]
        %v282 = vld [vmem:[%s1] sm:$0xf]
        %vm283 = vcmask 31744
        %v285 = vsel %vm283, %v250, 0
        %v288 = vsel %vm283, %v251, 0
        %v291 = vsel %vm283, %v252, 0
        %v294 = vsel %vm283, %v253, 0
        %v297 = vsel %vm283, %v254, 0
        %v300 = vsel %vm283, %v255, 0
        %v303 = vsel %vm283, %v256, 0
        %v306 = vsel %vm283, %v257, 0
        %v309 = vsel %vm283, %v258, 0
        %v312 = vsel %vm283, %v259, 0
        %v315 = vsel %vm283, %v260, 0
        %v318 = vsel %vm283, %v261, 0
        %v321 = vsel %vm283, %v262, 0
        %v324 = vsel %vm283, %v263, 0
        %v327 = vsel %vm283, %v264, 0
        %v330 = vsel %vm283, %v265, 0
        %v333 = vsel %vm283, %v266, 0
        %v336 = vsel %vm283, %v267, 0
        %v339 = vsel %vm283, %v268, 0
        %v342 = vsel %vm283, %v269, 0
        %v345 = vsel %vm283, %v270, 0
        %v348 = vsel %vm283, %v271, 0
        %v351 = vsel %vm283, %v272, 0
        %v354 = vsel %vm283, %v273, 0
        %v357 = vsel %vm283, %v274, 0
        %v360 = vsel %vm283, %v275, 0
        %v363 = vsel %vm283, %v276, 0
        %v366 = vsel %vm283, %v277, 0
        %v369 = vsel %vm283, %v278, 0
        %v372 = vsel %vm283, %v279, 0
        %v375 = vsel %vm283, %v280, 0
        %v378 = vsel %vm283, %v281, 0
        %vm380 = vcmask 1043456
        %v382 = vsel %vm380, %v282, 0
        %384 = vmatpush.msra.mxu0 0.0
        %385 = vmatpush.msra.mxu0 0.0
        %386 = vmatpush.msra.mxu0 0.0
        %387 = vmatpush.msra.mxu0 0.0
        %388 = vmatpush.msra.mxu0 0.0
        %389 = vmatpush.msra.mxu0 0.0
        %390 = vmatpush.msra.mxu0 0.0
        %391 = vmatpush.msra.mxu0 0.0
        %392 = vmatpush.msra.mxu0 0.0
        %393 = vmatpush.msra.mxu0 0.0
        %394 = vmatpush.msra.mxu0 0.0
        %395 = vmatpush.msra.mxu0 0.0
        %396 = vmatpush.msra.mxu0 0.0
        %397 = vmatpush.msra.mxu0 0.0
        %398 = vmatpush.msra.mxu0 0.0
        %399 = vmatpush.msra.mxu0 %v382
        %400 = vmatmul.f32.gmra.mxu0 %v285
        %v401 = vpop.f32.mrf.mxu0
        %v402 = vadd.f32 0.0, %v401
        %403 = vmatmul.f32.gmra.mxu0 %v288
        %v404 = vpop.f32.mrf.mxu0
        %v405 = vadd.f32 0.0, %v404
        %406 = vmatmul.f32.gmra.mxu0 %v291
        %v407 = vpop.f32.mrf.mxu0
        %v408 = vadd.f32 0.0, %v407
        %409 = vmatmul.f32.gmra.mxu0 %v294
        %v410 = vpop.f32.mrf.mxu0
        %v411 = vadd.f32 0.0, %v410
        %412 = vmatmul.f32.gmra.mxu0 %v297
        %v413 = vpop.f32.mrf.mxu0
        %v414 = vadd.f32 0.0, %v413
        %415 = vmatmul.f32.gmra.mxu0 %v300
        %v416 = vpop.f32.mrf.mxu0
        %v417 = vadd.f32 0.0, %v416
        %418 = vmatmul.f32.gmra.mxu0 %v303
        %v419 = vpop.f32.mrf.mxu0
        %v420 = vadd.f32 0.0, %v419
        %421 = vmatmul.f32.gmra.mxu0 %v306
        %v422 = vpop.f32.mrf.mxu0
        %v423 = vadd.f32 0.0, %v422
        %424 = vmatmul.f32.gmra.mxu0 %v309
        %v425 = vpop.f32.mrf.mxu0
        %v426 = vadd.f32 0.0, %v425
        %427 = vmatmul.f32.gmra.mxu0 %v312
        %v428 = vpop.f32.mrf.mxu0
        %v429 = vadd.f32 0.0, %v428
        %430 = vmatmul.f32.gmra.mxu0 %v315
        %v431 = vpop.f32.mrf.mxu0
        %v432 = vadd.f32 0.0, %v431
        %433 = vmatmul.f32.gmra.mxu0 %v318
        %v434 = vpop.f32.mrf.mxu0
        %v435 = vadd.f32 0.0, %v434
        %436 = vmatmul.f32.gmra.mxu0 %v321
        %v437 = vpop.f32.mrf.mxu0
        %v438 = vadd.f32 0.0, %v437
        %439 = vmatmul.f32.gmra.mxu0 %v324
        %v440 = vpop.f32.mrf.mxu0
        %v441 = vadd.f32 0.0, %v440
        %442 = vmatmul.f32.gmra.mxu0 %v327
        %v443 = vpop.f32.mrf.mxu0
        %v444 = vadd.f32 0.0, %v443
        %445 = vmatmul.f32.gmra.mxu0 %v330
        %v446 = vpop.f32.mrf.mxu0
        %v447 = vadd.f32 0.0, %v446
        %448 = vmatmul.f32.gmra.mxu0 %v333
        %v449 = vpop.f32.mrf.mxu0
        %v450 = vadd.f32 0.0, %v449
        %451 = vmatmul.f32.gmra.mxu0 %v336
        %v452 = vpop.f32.mrf.mxu0
        %v453 = vadd.f32 0.0, %v452
        %454 = vmatmul.f32.gmra.mxu0 %v339
        %v455 = vpop.f32.mrf.mxu0
        %v456 = vadd.f32 0.0, %v455
        %457 = vmatmul.f32.gmra.mxu0 %v342
        %v458 = vpop.f32.mrf.mxu0
        %v459 = vadd.f32 0.0, %v458
        %460 = vmatmul.f32.gmra.mxu0 %v345
        %v461 = vpop.f32.mrf.mxu0
        %v462 = vadd.f32 0.0, %v461
        %463 = vmatmul.f32.gmra.mxu0 %v348
        %v464 = vpop.f32.mrf.mxu0
        %v465 = vadd.f32 0.0, %v464
        %466 = vmatmul.f32.gmra.mxu0 %v351
        %v467 = vpop.f32.mrf.mxu0
        %v468 = vadd.f32 0.0, %v467
        %469 = vmatmul.f32.gmra.mxu0 %v354
        %v470 = vpop.f32.mrf.mxu0
        %v471 = vadd.f32 0.0, %v470
        %472 = vmatmul.f32.gmra.mxu0 %v357
        %v473 = vpop.f32.mrf.mxu0
        %v474 = vadd.f32 0.0, %v473
        %475 = vmatmul.f32.gmra.mxu0 %v360
        %v476 = vpop.f32.mrf.mxu0
        %v477 = vadd.f32 0.0, %v476
        %478 = vmatmul.f32.gmra.mxu0 %v363
        %v479 = vpop.f32.mrf.mxu0
        %v480 = vadd.f32 0.0, %v479
        %481 = vmatmul.f32.gmra.mxu0 %v366
        %v482 = vpop.f32.mrf.mxu0
        %v483 = vadd.f32 0.0, %v482
        %484 = vmatmul.f32.gmra.mxu0 %v369
        %v485 = vpop.f32.mrf.mxu0
        %v486 = vadd.f32 0.0, %v485
        %487 = vmatmul.f32.gmra.mxu0 %v372
        %v488 = vpop.f32.mrf.mxu0
        %v489 = vadd.f32 0.0, %v488
        %490 = vmatmul.f32.gmra.mxu0 %v375
        %v491 = vpop.f32.mrf.mxu0
        %v492 = vadd.f32 0.0, %v491
        %493 = vmatmul.f32.gmra.mxu0 %v378
        %v494 = vpop.f32.mrf.mxu0
        %v495 = vadd.f32 0.0, %v494
        %496 = vdwg.mxu0
        %497 = vst [vmem:[%s225] sm:$0xff] %v402
        %498 = vst [vmem:[%s225 + $0x8] sm:$0xff] %v405
        %499 = vst [vmem:[%s225 + $0x10] sm:$0xff] %v408
        %500 = vst [vmem:[%s225 + $0x18] sm:$0xff] %v411
        %501 = vst [vmem:[%s225 + $0x20] sm:$0xff] %v414
        %502 = vst [vmem:[%s225 + $0x28] sm:$0xff] %v417
        %503 = vst [vmem:[%s225 + $0x30] sm:$0xff] %v420
        %504 = vst [vmem:[%s225 + $0x38] sm:$0xff] %v423
        %505 = vst [vmem:[%s225 + $0x40] sm:$0xff] %v426
        %506 = vst [vmem:[%s225 + $0x48] sm:$0xff] %v429
        %507 = vst [vmem:[%s225 + $0x50] sm:$0xff] %v432
        %508 = vst [vmem:[%s225 + $0x58] sm:$0xff] %v435
        %509 = vst [vmem:[%s225 + $0x60] sm:$0xff] %v438
        %510 = vst [vmem:[%s225 + $0x68] sm:$0xff] %v441
        %511 = vst [vmem:[%s225 + $0x70] sm:$0xff] %v444
        %512 = vst [vmem:[%s225 + $0x78] sm:$0xff] %v447
        %513 = vst [vmem:[%s225 + $0x80] sm:$0xff] %v450
        %514 = vst [vmem:[%s225 + $0x88] sm:$0xff] %v453
        %515 = vst [vmem:[%s225 + $0x90] sm:$0xff] %v456
        %516 = vst [vmem:[%s225 + $0x98] sm:$0xff] %v459
        %517 = vst [vmem:[%s225 + $0xa0] sm:$0xff] %v462
        %518 = vst [vmem:[%s225 + $0xa8] sm:$0xff] %v465
        %519 = vst [vmem:[%s225 + $0xb0] sm:$0xff] %v468
        %520 = vst [vmem:[%s225 + $0xb8] sm:$0xff] %v471
        %521 = vst [vmem:[%s225 + $0xc0] sm:$0xff] %v474
        %522 = vst [vmem:[%s225 + $0xc8] sm:$0xff] %v477
        %523 = vst [vmem:[%s225 + $0xd0] sm:$0xff] %v480
        %524 = vst [vmem:[%s225 + $0xd8] sm:$0xff] %v483
        %525 = vst [vmem:[%s225 + $0xe0] sm:$0xff] %v486
        %526 = vst [vmem:[%s225 + $0xe8] sm:$0xff] %v489
        %527 = vst [vmem:[%s225 + $0xf0] sm:$0xff] %v492
        %528 = vst [vmem:[%s225 + $0xf8] sm:$0xff] %v495
        %v529 = vadd.f32 %v402, %v405
        %v530 = vadd.f32 %v529, %v408
        %v531 = vadd.f32 %v530, %v411
        %v532 = vadd.f32 %v531, %v414
        %v533 = vadd.f32 %v532, %v417
        %v534 = vadd.f32 %v533, %v420
        %v535 = vadd.f32 %v534, %v423
        %v536 = vadd.f32 %v535, %v426
        %v537 = vadd.f32 %v536, %v429
        %v538 = vadd.f32 %v537, %v432
        %v539 = vadd.f32 %v538, %v435
        %v540 = vadd.f32 %v539, %v438
        %v541 = vadd.f32 %v540, %v441
        %v542 = vadd.f32 %v541, %v444
        %v543 = vadd.f32 %v542, %v447
        %v544 = vadd.f32 %v543, %v450
        %v545 = vadd.f32 %v544, %v453
        %v546 = vadd.f32 %v545, %v456
        %v547 = vadd.f32 %v546, %v459
        %v548 = vadd.f32 %v547, %v462
        %v549 = vadd.f32 %v548, %v465
        %v550 = vadd.f32 %v549, %v468
        %v551 = vadd.f32 %v550, %v471
        %v552 = vadd.f32 %v551, %v474
        %v553 = vadd.f32 %v552, %v477
        %v554 = vadd.f32 %v553, %v480
        %v555 = vadd.f32 %v554, %v483
        %v556 = vadd.f32 %v555, %v486
        %v557 = vadd.f32 %v556, %v489
        %v558 = vadd.f32 %v557, %v492
        %v559 = vadd.f32 %v558, %v495
        %v560 = vrot.slane %v559, 4
        %v561 = vadd.f32 %v559, %v560
        %v562 = vrot.slane %v561, 2
        %v563 = vadd.f32 %v561, %v562
        %v564 = vrot.slane %v563, 1
        %v565 = vadd.f32 %v563, %v564
        %v566 = vmul.f32 %v565, 0.00390625
        %v567 = vsub.f32 %v402, %v566
        %v568 = vsub.f32 %v405, %v566
        %v569 = vsub.f32 %v408, %v566
        %v570 = vsub.f32 %v411, %v566
        %v571 = vsub.f32 %v414, %v566
        %v572 = vsub.f32 %v417, %v566
        %v573 = vsub.f32 %v420, %v566
        %v574 = vsub.f32 %v423, %v566
        %v575 = vsub.f32 %v426, %v566
        %v576 = vsub.f32 %v429, %v566
        %v577 = vsub.f32 %v432, %v566
        %v578 = vsub.f32 %v435, %v566
        %v579 = vsub.f32 %v438, %v566
        %v580 = vsub.f32 %v441, %v566
        %v581 = vsub.f32 %v444, %v566
        %v582 = vsub.f32 %v447, %v566
        %v583 = vsub.f32 %v450, %v566
        %v584 = vsub.f32 %v453, %v566
        %v585 = vsub.f32 %v456, %v566
        %v586 = vsub.f32 %v459, %v566
        %v587 = vsub.f32 %v462, %v566
        %v588 = vsub.f32 %v465, %v566
        %v589 = vsub.f32 %v468, %v566
        %v590 = vsub.f32 %v471, %v566
        %v591 = vsub.f32 %v474, %v566
        %v592 = vsub.f32 %v477, %v566
        %v593 = vsub.f32 %v480, %v566
        %v594 = vsub.f32 %v483, %v566
        %v595 = vsub.f32 %v486, %v566
        %v596 = vsub.f32 %v489, %v566
        %v597 = vsub.f32 %v492, %v566
        %v598 = vsub.f32 %v495, %v566
        %v599 = vmul.f32 %v567, %v567
        %v600 = vmul.f32 %v568, %v568
        %v601 = vmul.f32 %v569, %v569
        %v602 = vmul.f32 %v570, %v570
        %v603 = vmul.f32 %v571, %v571
        %v604 = vmul.f32 %v572, %v572
        %v605 = vmul.f32 %v573, %v573
        %v606 = vmul.f32 %v574, %v574
        %v607 = vmul.f32 %v575, %v575
        %v608 = vmul.f32 %v576, %v576
        %v609 = vmul.f32 %v577, %v577
        %v610 = vmul.f32 %v578, %v578
        %v611 = vmul.f32 %v579, %v579
        %v612 = vmul.f32 %v580, %v580
        %v613 = vmul.f32 %v581, %v581
        %v614 = vmul.f32 %v582, %v582
        %v615 = vmul.f32 %v583, %v583
        %v616 = vmul.f32 %v584, %v584
        %v617 = vmul.f32 %v585, %v585
        %v618 = vmul.f32 %v586, %v586
        %v619 = vmul.f32 %v587, %v587
        %v620 = vmul.f32 %v588, %v588
        %v621 = vmul.f32 %v589, %v589
        %v622 = vmul.f32 %v590, %v590
        %v623 = vmul.f32 %v591, %v591
        %v624 = vmul.f32 %v592, %v592
        %v625 = vmul.f32 %v593, %v593
        %v626 = vmul.f32 %v594, %v594
        %v627 = vmul.f32 %v595, %v595
        %v628 = vmul.f32 %v596, %v596
        %v629 = vmul.f32 %v597, %v597
        %v630 = vmul.f32 %v598, %v598
        %v631 = vadd.f32 %v599, %v600
        %v632 = vadd.f32 %v631, %v601
        %v633 = vadd.f32 %v632, %v602
        %v634 = vadd.f32 %v633, %v603
        %v635 = vadd.f32 %v634, %v604
        %v636 = vadd.f32 %v635, %v605
        %v637 = vadd.f32 %v636, %v606
        %v638 = vadd.f32 %v637, %v607
        %v639 = vadd.f32 %v638, %v608
        %v640 = vadd.f32 %v639, %v609
        %v641 = vadd.f32 %v640, %v610
        %v642 = vadd.f32 %v641, %v611
        %v643 = vadd.f32 %v642, %v612
        %v644 = vadd.f32 %v643, %v613
        %v645 = vadd.f32 %v644, %v614
        %v646 = vadd.f32 %v645, %v615
        %v647 = vadd.f32 %v646, %v616
        %v648 = vadd.f32 %v647, %v617
        %v649 = vadd.f32 %v648, %v618
        %v650 = vadd.f32 %v649, %v619
        %v651 = vadd.f32 %v650, %v620
        %v652 = vadd.f32 %v651, %v621
        %v653 = vadd.f32 %v652, %v622
        %v654 = vadd.f32 %v653, %v623
        %v655 = vadd.f32 %v654, %v624
        %v656 = vadd.f32 %v655, %v625
        %v657 = vadd.f32 %v656, %v626
        %v658 = vadd.f32 %v657, %v627
        %v659 = vadd.f32 %v658, %v628
        %v660 = vadd.f32 %v659, %v629
        %v661 = vadd.f32 %v660, %v630
        %v662 = vrot.slane %v661, 4
        %v663 = vadd.f32 %v661, %v662
        %v664 = vrot.slane %v663, 2
        %v665 = vadd.f32 %v663, %v664
        %v666 = vrot.slane %v665, 1
        %v667 = vadd.f32 %v665, %v666
        %668 = vst [vmem:[%s231] sm:$0x1] %v565
        %669 = vst [vmem:[%s237] sm:$0x1] %v667
        %s670 = sand.u32 %s93, 1
        %s671 = scalar_lea.sflag [#allocation3], %s670
        %s672 = sand.u32 %s93, 1
        %s673 = smul.addr %s672, 256
        %s674 = scalar_lea.vmem [#allocation2], %s673
        %s675 = sand.u32 %s22, 1
        %s676 = scalar_lea.sflag [#allocation5], %s675
        %s677 = sand.u32 %s121, 1
        %s678 = scalar_lea.vmem [#allocation4], %s677
        %s679 = sand.u32 %s22, 1
        %s680 = scalar_lea.sflag [#allocation5], %s679
        %s681 = sand.u32 %s149, 1
        %s682 = scalar_lea.vmem [#allocation6], %s681
        // Predicated region
        $region29: #{tpu_custom_call.1} parent=27 // pred_check
          %p683 = pneg %p103
        $region30: #{tpu_custom_call.1} parent=27 // pred_check_branch
          %685 = sbr.rel (%p683) target = $region32
        $region31: #{tpu_custom_call.1} parent=27 // pred_region
          %s686 = smul.u32 16, %s27
          %688 = vsyncadd %s671, 0
          %s689 = smul.addr %s686, 2
          %s690 = smul.addr %s26, 32
          %s691 = sadd.s32 %s689, %s690
          %s692 = smul.addr %s691, 8
          %s693 = scalar_lea.hbm %s2, %s692
          %s694 = sshll.u32 %s674, 4
          %s695 = int_to_ptr.vmem [resolvable:$true] %s694
          %s696 = sshll.u32 %s693, 4
          %s697 = int_to_ptr.hbm [resolvable:$true] %s696
          %702 = dma.vmem_to_hbm [thread:$0]  %s695, 4096, %s697, %s671, 128, 128, 8
        $region32: #{tpu_custom_call.1} parent=27 // pred_fallthru
          _
        // Predicated region
        $region33: #{tpu_custom_call.1} parent=27 // pred_check
          %p703 = pneg %p131
        $region34: #{tpu_custom_call.1} parent=27 // pred_check_branch
          %705 = sbr.rel (%p703) target = $region36
        $region35: #{tpu_custom_call.1} parent=27 // pred_region
          %707 = vsyncadd %s676, 0
          %s708 = sadd.s32 %s27, %s26
          %s709 = scalar_lea.hbm %s3, %s708
          %s711 = sshll.u32 %s678, 4
          %s712 = int_to_ptr.vmem [resolvable:$true] %s711
          %s713 = sshll.u32 %s709, 4
          %s714 = int_to_ptr.hbm [resolvable:$true] %s713
          %716 = dma.vmem_to_hbm [thread:$0]  %s712, 16, %s714, %s676
        $region36: #{tpu_custom_call.1} parent=27 // pred_fallthru
          _
        // Predicated region
        $region37: #{tpu_custom_call.1} parent=27 // pred_check
          %p717 = pneg %p159
        $region38: #{tpu_custom_call.1} parent=27 // pred_check_branch
          %719 = sbr.rel (%p717) target = $region40
        $region39: #{tpu_custom_call.1} parent=27 // pred_region
          %721 = vsyncadd %s680, 0
          %s722 = sadd.s32 %s27, %s26
          %s723 = scalar_lea.hbm %s4, %s722
          %s725 = sshll.u32 %s682, 4
          %s726 = int_to_ptr.vmem [resolvable:$true] %s725
          %s727 = sshll.u32 %s723, 4
          %s728 = int_to_ptr.hbm [resolvable:$true] %s727
          %730 = dma.vmem_to_hbm [thread:$0]  %s726, 16, %s728, %s680
        $region40: #{tpu_custom_call.1} parent=27 // pred_fallthru
          _
      $region28: #{tpu_custom_call.1} parent=5 // pred_fallthru
        _
      %p731 = scmp.le.s32.totalorder 2, %s17
      // Predicated region
      $region41: #{tpu_custom_call.1} parent=5 // pred_check
        %p732 = pneg %p731
      $region42: #{tpu_custom_call.1} parent=5 // pred_check_branch
        %734 = sbr.rel (%p732) target = $region44
      $region43: #{tpu_custom_call.1} parent=5 // pred_region
        %s735 = ssub.s32 %s17, 2
        // Predicated region
        $region45: #{tpu_custom_call.1} parent=43 // pred_check
          %p736 = pneg %p109
        $region46: #{tpu_custom_call.1} parent=43 // pred_check_branch
          %738 = sbr.rel (%p736) target = $region48
        $region47: #{tpu_custom_call.1} parent=43 // pred_region
          %s739 = sand.u32 %s94, 1
          %s740 = scalar_lea.sflag [#allocation3], %s739
          %s741 = sand.u32 %s94, 1
          %s742 = smul.addr %s741, 256
          %s743 = scalar_lea.vmem [#allocation2], %s742
          %745 = dma.done %s740, 4096
        $region48: #{tpu_custom_call.1} parent=43 // pred_fallthru
          _
        // Predicated region
        $region49: #{tpu_custom_call.1} parent=43 // pred_check
          %p746 = pneg %p137
        $region50: #{tpu_custom_call.1} parent=43 // pred_check_branch
          %748 = sbr.rel (%p746) target = $region52
        $region51: #{tpu_custom_call.1} parent=43 // pred_region
          %s749 = sand.u32 %s23, 1
          %s750 = scalar_lea.sflag [#allocation5], %s749
          %s751 = sand.u32 %s122, 1
          %s752 = scalar_lea.vmem [#allocation4], %s751
          %754 = dma.done %s750, 16
        $region52: #{tpu_custom_call.1} parent=43 // pred_fallthru
          _
        // Predicated region
        $region53: #{tpu_custom_call.1} parent=43 // pred_check
          %p755 = pneg %p165
        $region54: #{tpu_custom_call.1} parent=43 // pred_check_branch
          %757 = sbr.rel (%p755) target = $region56
        $region55: #{tpu_custom_call.1} parent=43 // pred_region
          %s758 = sand.u32 %s23, 1
          %s759 = scalar_lea.sflag [#allocation5], %s758
          %s760 = sand.u32 %s150, 1
          %s761 = scalar_lea.vmem [#allocation6], %s760
          %763 = dma.done %s759, 16
        $region56: #{tpu_custom_call.1} parent=43 // pred_fallthru
          _
      $region44: #{tpu_custom_call.1} parent=5 // pred_fallthru
        _
    $region6: #{tpu_custom_call.1} parent=1 // loop_footer
      %s21 = sadd.s32 1, %s17
    $region7: #{tpu_custom_call.1} parent=1 // loop_footer_branch
      %16 = sbr.rel target = $region3
    $region8: #{tpu_custom_call.1} parent=1 // loop_exit
      _
    %764 = vsyncpa [#allocation3], 1
    %s765 = scalar_lea.sflag [#allocation3], 1
    %766 = vsyncpa %s765, 1
    %767 = vsyncpa [#allocation5], 1
    %s768 = scalar_lea.sflag [#allocation5], 1
    %769 = vsyncpa %s768, 1

</llo_original>
